<compile_context>
chip_gen: v7x
topology: tpu7x:2x2x1
jax: 0.10.0
libtpu: 0.0.40
codegen_flags: <defaults>
</compile_context>

<pallas_src>
import functools

import jax
import jax.numpy as jnp
from jax import lax
from jax.experimental import pallas as pl
from jax.experimental.pallas import tpu as pltpu


def _gelu_f32(z, approximate: str):
    """GELU in float32, matching torch.nn.functional.gelu semantics."""
    if approximate == "tanh":
        c = jnp.float32(0.7978845608028654)  # sqrt(2/pi)
        return 0.5 * z * (1.0 + jnp.tanh(c * (z + 0.044715 * z * z * z)))
    # exact: 0.5 * x * (1 + erf(x / sqrt(2)))
    return 0.5 * z * (1.0 + lax.erf(z * jnp.float32(0.7071067811865476)))


def _linear_gelu_kernel(x_ref, w_ref, *rest, approximate, has_bias, acc_in_out):
    """Fused (x @ W^T + b) -> GELU.

    Grid = (Mp/tm, Np/tn, Kp/tk), reduction axis last.
    x_ref: (tm, tk), w_ref: (tn, tk) in native nn.Linear layout.
    """
    if has_bias:
        b_ref, rest = rest[0], rest[1:]
    else:
        b_ref = None
    if acc_in_out:
        # f32 output: accumulate directly into the resident output block.
        (o_ref,) = rest
        acc_ref = o_ref
    else:
        o_ref, acc_ref = rest

    k = pl.program_id(2)

    @pl.when(k == 0)
    def _():
        acc_ref[...] = jnp.zeros_like(acc_ref)

    # Contract last dims of x (tm, tk) and w (tn, tk)  ->  (tm, tn).
    acc_ref[...] += lax.dot_general(
        x_ref[...],
        w_ref[...],
        dimension_numbers=(((1,), (1,)), ((), ())),
        preferred_element_type=jnp.float32,
    )

    @pl.when(k == pl.num_programs(2) - 1)
    def _():
        z = acc_ref[...]
        if has_bias:
            z = z + b_ref[...].astype(jnp.float32)  # (tm, tn) + (1, tn)
        o_ref[...] = _gelu_f32(z, approximate).astype(o_ref.dtype)


def _ceil_to(x, m):
    return ((x + m - 1) // m) * m


def _pick_tile(dim, target):
    """Return (tile, padded_dim): full extent for small dims, else `target`."""
    if dim <= target:
        return dim, dim
    return target, _ceil_to(dim, target)


def gelu_block(hidden_states, weight, bias=None, *, approximate="none",
               tm=None, tn=None, tk=None):
    """
    hidden_states: (..., dim_in)
    weight:        (dim_out, dim_in)   -- nn.Linear layout (NOT transposed)
    bias:          (dim_out,) or None
    Returns:       (..., dim_out), dtype of hidden_states.
    """
    *lead, dim_in = hidden_states.shape
    dim_out, wk = weight.shape
    assert wk == dim_in, "weight must be (dim_out, dim_in)"

    x2d = hidden_states.reshape(-1, dim_in)
    M, K = x2d.shape
    N = dim_out
    out_dtype = hidden_states.dtype

    # Tile targets: 512 is a multiple of 8/128 (layout), 128 (v5e MXU) and
    # 256 (v6e/v7x MXU); working set stays ~O(10 MiB) so it fits every gen.
    tm, Mp = _pick_tile(M, tm or 512)
    tn, Np = _pick_tile(N, tn or 512)
    tk, Kp = _pick_tile(K, tk or 512)

    # Zero-pad ragged shapes (zeros contribute nothing to the contraction;
    # padded output rows/cols are sliced off afterwards).
    if Mp != M or Kp != K:
        x2d = jnp.pad(x2d, ((0, Mp - M), (0, Kp - K)))
    w = weight
    if Np != N or Kp != K:
        w = jnp.pad(w, ((0, Np - N), (0, Kp - K)))

    has_bias = bias is not None
    acc_in_out = out_dtype == jnp.float32

    inputs = [x2d, w]
    in_specs = [
        pl.BlockSpec((tm, tk), lambda i, j, k: (i, k)),   # x tile
        pl.BlockSpec((tn, tk), lambda i, j, k: (j, k)),   # W tile (native layout)
    ]
    if has_bias:
        b_row = bias.reshape(1, N).astype(jnp.float32)
        if Np != N:
            b_row = jnp.pad(b_row, ((0, 0), (0, Np - N)))
        inputs.append(b_row)
        in_specs.append(pl.BlockSpec((1, tn), lambda i, j, k: (0, j)))

    scratch_shapes = [] if acc_in_out else [pltpu.VMEM((tm, tn), jnp.float32)]

    kernel = functools.partial(
        _linear_gelu_kernel,
        approximate=approximate,
        has_bias=has_bias,
        acc_in_out=acc_in_out,
    )

    x_bytes = jnp.dtype(hidden_states.dtype).itemsize
    w_bytes = jnp.dtype(weight.dtype).itemsize
    o_bytes = jnp.dtype(out_dtype).itemsize

    cost = pl.CostEstimate(
        flops=2 * M * N * K,
        transcendentals=M * N,
        bytes_accessed=(M * K * x_bytes + N * K * w_bytes + M * N * o_bytes
                        + (N * 4 if has_bias else 0)),
    )

    # Only raise scoped VMEM when the (double-buffered) tile working set needs
    # it; cap well under v7x's 64 MiB physical VMEM.
    vmem_need = (2 * tm * tk * x_bytes + 2 * tk * tn * w_bytes
                 + 2 * tm * tn * o_bytes
                 + (0 if acc_in_out else tm * tn * 4)
                 + (2 * tn * 4 if has_bias else 0))
    cp_kwargs = dict(dimension_semantics=("parallel", "parallel", "arbitrary"))
    if vmem_need > (24 << 20):
        cp_kwargs["vmem_limit_bytes"] = min(vmem_need * 3 // 2, 60 << 20)

    out2d = pl.pallas_call(
        kernel,
        out_shape=jax.ShapeDtypeStruct((Mp, Np), out_dtype),
        grid_spec=pltpu.PrefetchScalarGridSpec(
            num_scalar_prefetch=0,
            grid=(Mp // tm, Np // tn, Kp // tk),
            in_specs=in_specs,
            out_specs=pl.BlockSpec((tm, tn), lambda i, j, k: (i, j)),
            scratch_shapes=scratch_shapes,
        ),
        compiler_params=pltpu.CompilerParams(**cp_kwargs),
        cost_estimate=cost,
    )(*inputs)

    out2d = out2d[:M, :N]
    return out2d.reshape(*lead, dim_out)


def _reference(hidden_states, weight, bias, approximate):
    z = jnp.einsum(
        "...i,oi->...o",
        hidden_states.astype(jnp.float32),
        weight.astype(jnp.float32),
        precision=lax.Precision.HIGHEST,
    )
    if bias is not None:
        z = z + bias.astype(jnp.float32)
    return _gelu_f32(z, approximate)  # f32 reference


if __name__ == "__main__":
    key = jax.random.PRNGKey(0)
    kx, kw, kb = jax.random.split(key, 3)

    # Small shapes consistent with the module: (batch, seq, dim_in) -> dim_out.
    batch, seq, dim_in, dim_out = 2, 8, 32, 32
    bound = 1.0 / jnp.sqrt(dim_in)
    weight = jax.random.uniform(kw, (dim_out, dim_in), jnp.float32, -bound, bound)
    bias = jax.random.uniform(kb, (dim_out,), jnp.float32, -bound, bound)
    x = jax.random.normal(kx, (batch, seq, dim_in), jnp.float32)

    # 1) f32, with bias, exact + tanh GELU (f32 accumulate-in-output path).
    for approximate in ("none", "tanh"):
        out = jax.block_until_ready(gelu_block(x, weight, bias, approximate=approximate))
        ref = _reference(x, weight, bias, approximate)
        assert out.shape == (batch, seq, dim_out)
        assert jnp.allclose(out.astype(jnp.float32), ref, atol=1e-5, rtol=1e-5), (
            f"mismatch for approximate={approximate}"
        )

    # 2) f32, no bias (bias DMA + add skipped entirely).
    out = jax.block_until_ready(gelu_block(x, weight, None, approximate="none"))
    ref = _reference(x, weight, None, "none")
    assert jnp.allclose(out.astype(jnp.float32), ref, atol=1e-5, rtol=1e-5), "no-bias mismatch"

    # 3) bf16 inputs (separate f32 VMEM accumulator path), tanh GELU.
    xb = x.astype(jnp.bfloat16)
    wb = weight.astype(jnp.bfloat16)
    bb = bias.astype(jnp.bfloat16)
    out = jax.block_until_ready(gelu_block(xb, wb, bb, approximate="tanh"))
    ref = _reference(xb, wb, bb, "tanh")
    assert out.dtype == jnp.bfloat16
    assert jnp.allclose(out.astype(jnp.float32), ref, atol=5e-2, rtol=5e-2), "bf16 mismatch"

    # 4) exercise the tiled + padded path with explicit small tile targets.
    M2, K2, N2 = 48, 192, 160
    x2 = jax.random.normal(kx, (M2, K2), jnp.float32)
    w2 = jax.random.uniform(kw, (N2, K2), jnp.float32, -0.1, 0.1)
    b2 = jax.random.uniform(kb, (N2,), jnp.float32, -0.1, 0.1)
    out = jax.block_until_ready(
        gelu_block(x2, w2, b2, approximate="tanh", tm=16, tn=128, tk=128))
    ref = _reference(x2, w2, b2, "tanh")
    assert out.shape == (M2, N2)
    assert jnp.allclose(out.astype(jnp.float32), ref, atol=1e-4, rtol=1e-4), "tiled/padded mismatch"

    print("KERNEL_OK")
</pallas_src>

<mosaic_0001>
module attributes {stable_mosaic.version = 11 : i64} {
  func.func @_linear_gelu_kernel(%arg0: i32, %arg1: i32, %arg2: i32, %arg3: memref<16x32xf32, #tpu.memory_space<vmem>>, %arg4: memref<32x32xf32, #tpu.memory_space<vmem>>, %arg5: memref<1x32xf32, #tpu.memory_space<vmem>>, %arg6: memref<16x32xf32, #tpu.memory_space<vmem>>) attributes {dimension_semantics = [#tpu.dimension_semantics<parallel>, #tpu.dimension_semantics<parallel>, #tpu.dimension_semantics<arbitrary>], iteration_bounds = array<i64: 1, 1, 1>, scalar_prefetch = 0 : i64, scratch_operands = 0 : i64, tpu.core_type = #tpu.core_type<tc>, window_params = [{transform_indices = @transform_0, window_bounds = array<i64: 16, 32>}, {transform_indices = @transform_1, window_bounds = array<i64: 32, 32>}, {transform_indices = @transform_2, window_bounds = array<i64: 1, 32>}, {transform_indices = @transform_3, window_bounds = array<i64: 16, 32>}]} {
    %c0_i32 = arith.constant 0 : i32
    %0 = arith.cmpi eq, %arg2, %c0_i32 : i32
    %1 = arith.extui %0 : i1 to i32
    %c0_i32_0 = arith.constant 0 : i32
    %2 = arith.cmpi ne, %1, %c0_i32_0 : i32
    scf.if %2 {
      %cst_10 = arith.constant 0.000000e+00 : f32
      %12 = vector.broadcast %cst_10 : f32 to vector<16x32xf32>
      %c0_11 = arith.constant 0 : index
      %c0_12 = arith.constant 0 : index
      %13 = vector.load %arg6[%c0_11, %c0_12] : memref<16x32xf32, #tpu.memory_space<vmem>>, vector<16x32xf32>
      tpu.vector_store %arg6[%c0_11, %c0_12], %12 {strides = array<i32>} : memref<16x32xf32, #tpu.memory_space<vmem>>, vector<16x32xf32>,
    } else {
    }
    %c0 = arith.constant 0 : index
    %c0_1 = arith.constant 0 : index
    %3 = vector.load %arg6[%c0, %c0_1] : memref<16x32xf32, #tpu.memory_space<vmem>>, vector<16x32xf32>
    %c0_2 = arith.constant 0 : index
    %c0_3 = arith.constant 0 : index
    %4 = vector.load %arg3[%c0_2, %c0_3] : memref<16x32xf32, #tpu.memory_space<vmem>>, vector<16x32xf32>
    %c0_4 = arith.constant 0 : index
    %c0_5 = arith.constant 0 : index
    %5 = vector.load %arg4[%c0_4, %c0_5] : memref<32x32xf32, #tpu.memory_space<vmem>>, vector<32x32xf32>
    %cst = arith.constant dense<0.000000e+00> : vector<16x32xf32>
    %6 = tpu.matmul %4, %5, %cst {dimension_numbers = #tpu.dot_dimension_numbers<[1], [1], [0], [0], [0, 0, 1, 0], [], []>} : vector<16x32xf32>, vector<32x32xf32>, vector<16x32xf32> -> vector<16x32xf32>
    %7 = arith.addf %3, %6 : vector<16x32xf32>
    %c0_6 = arith.constant 0 : index
    %c0_7 = arith.constant 0 : index
    %8 = vector.load %arg6[%c0_6, %c0_7] : memref<16x32xf32, #tpu.memory_space<vmem>>, vector<16x32xf32>
    tpu.vector_store %arg6[%c0_6, %c0_7], %7 {strides = array<i32>} : memref<16x32xf32, #tpu.memory_space<vmem>>, vector<16x32xf32>,
    %c0_i32_8 = arith.constant 0 : i32
    %9 = arith.cmpi eq, %arg2, %c0_i32_8 : i32
    %10 = arith.extui %9 : i1 to i32
    %c0_i32_9 = arith.constant 0 : i32
    %11 = arith.cmpi ne, %10, %c0_i32_9 : i32
    scf.if %11 {
      %c0_10 = arith.constant 0 : index
      %c0_11 = arith.constant 0 : index
      %12 = vector.load %arg6[%c0_10, %c0_11] : memref<16x32xf32, #tpu.memory_space<vmem>>, vector<16x32xf32>
      %c0_12 = arith.constant 0 : index
      %c0_13 = arith.constant 0 : index
      %13 = vector.load %arg5[%c0_12, %c0_13] : memref<1x32xf32, #tpu.memory_space<vmem>>, vector<1x32xf32>
      %14 = vector.broadcast %13 : vector<1x32xf32> to vector<16x32xf32>
      %15 = arith.addf %12, %14 : vector<16x32xf32>
      %cst_14 = arith.constant 5.000000e-01 : f32
      %16 = vector.broadcast %cst_14 : f32 to vector<16x32xf32>
      %17 = arith.mulf %16, %15 : vector<16x32xf32>
      %cst_15 = arith.constant 0.707106769 : f32
      %18 = vector.broadcast %cst_15 : f32 to vector<16x32xf32>
      %19 = arith.mulf %15, %18 : vector<16x32xf32>
      %20 = math.erf %19 : vector<16x32xf32>
      %cst_16 = arith.constant 1.000000e+00 : f32
      %21 = vector.broadcast %cst_16 : f32 to vector<16x32xf32>
      %22 = arith.addf %21, %20 : vector<16x32xf32>
      %23 = arith.mulf %17, %22 : vector<16x32xf32>
      %c0_17 = arith.constant 0 : index
      %c0_18 = arith.constant 0 : index
      %24 = vector.load %arg6[%c0_17, %c0_18] : memref<16x32xf32, #tpu.memory_space<vmem>>, vector<16x32xf32>
      tpu.vector_store %arg6[%c0_17, %c0_18], %23 {strides = array<i32>} : memref<16x32xf32, #tpu.memory_space<vmem>>, vector<16x32xf32>,
    } else {
    }
    return
  }
  func.func @transform_0(%arg0: i32, %arg1: i32, %arg2: i32) -> (i32, i32) {
    %c0_i32 = arith.constant 0 : i32
    return %arg0, %arg2 : i32, i32
  }
  func.func @transform_1(%arg0: i32, %arg1: i32, %arg2: i32) -> (i32, i32) {
    %c0_i32 = arith.constant 0 : i32
    return %arg1, %arg2 : i32, i32
  }
  func.func @transform_2(%arg0: i32, %arg1: i32, %arg2: i32) -> (i32, i32) {
    %c0_i32 = arith.constant 0 : i32
    %c0_i32_0 = arith.constant 0 : i32
    return %c0_i32, %arg1 : i32, i32
  }
  func.func @transform_3(%arg0: i32, %arg1: i32, %arg2: i32) -> (i32, i32) {
    %c0_i32 = arith.constant 0 : i32
    return %arg0, %arg1 : i32, i32
  }
}

</mosaic_0001>

<llo_original>
// kernel: tpu_custom_call.1
$region0: #{tpu_custom_call.1}
  #allocation0 [shape = 'u32[]', space=smem, size = 0x4, offset = 0x4, fixed_abs, tag = 'smem constant byte address 0x4 - core index']
  #allocation1 [shape = 'u32[144,128]{1,0:T(1,128)}', space=vmem, size = 0x12000, scoped, tag = 'internal scratch']
  %s0 = inlined_call_operand.hbm [shape: f32[16,32], index: 0, kind: input, shape index: {}]
  %s1 = inlined_call_operand.hbm [shape: f32[32,32], index: 1, kind: input, shape index: {}]
  %s2 = inlined_call_operand.vmem [shape: f32[1,32], index: 2, kind: input, shape index: {}]
  %s3 = inlined_call_operand.hbm [shape: f32[16,32], index: 3, kind: output, shape index: {}]
  %s4 = sld [smem:[#allocation0]]
  $region38: #{tpu_custom_call.1} parent=0
    _
  %s6 = ssub.s32 1, %s4
  %s7 = scalar_select 0, %s6, %s4
  $region1: #{tpu_custom_call.1} parent=0
    #allocation2 [shape = 'u8[8192]{0}', space=vmem, size = 0x2000, scoped, tag = 'input window, operand 0, single buffered']
    #allocation3 [shape = 's32[1]{0}', space=sflag, size = 0x4, scoped, tag = 'scoped memory for tpu_custom_call.1']
    #allocation4 [shape = 's32[1]{0}', space=sflag, size = 0x4, scoped, tag = 'scoped memory for tpu_custom_call.1']
    #allocation5 [shape = 'u8[16384]{0}', space=vmem, size = 0x4000, scoped, tag = 'input window, operand 1, single buffered']
    #allocation6 [shape = 's32[1]{0}', space=sflag, size = 0x4, scoped, tag = 'scoped memory for tpu_custom_call.1']
    #allocation7 [shape = 'u8[8192]{0}', space=vmem, size = 0x2000, scoped, tag = 'output window, operand 0, single buffered']
    %8 = vsyncpa [#allocation3], 0
    %9 = vsyncpa [#allocation6], 0
    %10 = vsyncpa [#allocation4], 0
    // Predicated region
    $region2: #{tpu_custom_call.1} parent=1 // pred_check
      _
    $region3: #{tpu_custom_call.1} parent=1 // pred_check_branch
      %12 = sbr.rel (0) target = $region5
    $region4: #{tpu_custom_call.1} parent=1 // pred_region
      %s14 = ssub.s32 256, 256
      %15 = vsyncadd [#allocation3], %s14
      %s16 = sshll.u32 [#allocation2], 4
      %s17 = int_to_ptr.vmem [resolvable:$true] %s16
      %22 = dma.hbm_to_vmem [thread:$0]  %s0, 256, %s17, [#allocation3], 128, 128, 8
    $region5: #{tpu_custom_call.1} parent=1 // pred_fallthru
      _
    // Predicated region
    $region6: #{tpu_custom_call.1} parent=1 // pred_check
      _
    $region7: #{tpu_custom_call.1} parent=1 // pred_check_branch
      %24 = sbr.rel (0) target = $region9
    $region8: #{tpu_custom_call.1} parent=1 // pred_region
      %s26 = ssub.s32 512, 512
      %27 = vsyncadd [#allocation6], %s26
      %s28 = sshll.u32 [#allocation5], 4
      %s29 = int_to_ptr.vmem [resolvable:$true] %s28
      %34 = dma.hbm_to_vmem [thread:$0]  %s1, 512, %s29, [#allocation6], 128, 128, 8
    $region9: #{tpu_custom_call.1} parent=1 // pred_fallthru
      _
    // Predicated region
    $region10: #{tpu_custom_call.1} parent=1 // pred_check
      _
    $region11: #{tpu_custom_call.1} parent=1 // pred_check_branch
      %36 = sbr.rel (0) target = $region13
    $region12: #{tpu_custom_call.1} parent=1 // pred_region
      _
    $region13: #{tpu_custom_call.1} parent=1 // pred_fallthru
      _
    // Predicated region
    $region14: #{tpu_custom_call.1} parent=1 // pred_check
      _
    $region15: #{tpu_custom_call.1} parent=1 // pred_check_branch
      %38 = sbr.rel (0) target = $region17
    $region16: #{tpu_custom_call.1} parent=1 // pred_region
      %39 = dma.done [#allocation3], 256
    $region17: #{tpu_custom_call.1} parent=1 // pred_fallthru
      _
    // Predicated region
    $region18: #{tpu_custom_call.1} parent=1 // pred_check
      _
    $region19: #{tpu_custom_call.1} parent=1 // pred_check_branch
      %41 = sbr.rel (0) target = $region21
    $region20: #{tpu_custom_call.1} parent=1 // pred_region
      %42 = dma.done [#allocation6], 512
    $region21: #{tpu_custom_call.1} parent=1 // pred_fallthru
      _
    %p43 = scmp.eq.s32.totalorder 0, 0
    // Predicated region
    $region22: #{tpu_custom_call.1} parent=1 // pred_check
      %p44 = pneg %p43
    $region23: #{tpu_custom_call.1} parent=1 // pred_check_branch
      %46 = sbr.rel (%p44) target = $region25
    $region24: #{tpu_custom_call.1} parent=1 // pred_region
      %vm47 = vcmask 261120
      %48 = vst.msk [vmem:[#allocation7] sm:$0xff] %vm47, 0.0
      %49 = vst.msk [vmem:[#allocation7 + $0x8] sm:$0xff] %vm47, 0.0
    $region25: #{tpu_custom_call.1} parent=1 // pred_fallthru
      _
    %v50 = vld [vmem:[#allocation7] sm:$0xff]
    %v51 = vld [vmem:[#allocation7 + $0x8] sm:$0xff]
    %v52 = vld [vmem:[#allocation2] sm:$0xff]
    %v53 = vld [vmem:[#allocation2 + $0x8] sm:$0xff]
    %v54 = vld [vmem:[#allocation5] sm:$0xff]
    %v55 = vld [vmem:[#allocation5 + $0x8] sm:$0xff]
    %v56 = vld [vmem:[#allocation5 + $0x10] sm:$0xff]
    %v57 = vld [vmem:[#allocation5 + $0x18] sm:$0xff]
    %vm58 = vcmask 261120
    %v60 = vsel %vm58, %v52, 0
    %v63 = vsel %vm58, %v53, 0
    %v66 = vsel %vm58, %v54, 0
    %v69 = vsel %vm58, %v55, 0
    %v72 = vsel %vm58, %v56, 0
    %v75 = vsel %vm58, %v57, 0
    %77 = vmatprep.subr.mxu0 0.0
    %78 = vmatpush1.xpose.msra.mxu0 %v66
    %79 = vmatprep.subr.mxu0 0.0
    %80 = vmatpush1.xpose.msra.mxu0 %v69
    %81 = vmatprep.subr.mxu0 0.0
    %82 = vmatpush1.xpose.msra.mxu0 %v72
    %83 = vmatprep.subr.mxu0 0.0
    %84 = vmatpush1.xpose.msra.mxu0 %v75
    %85 = vmatprep.subr.mxu0 0.0
    %86 = vmatpush1.xpose.msra.mxu0 0.0
    %87 = vmatprep.subr.mxu0 0.0
    %88 = vmatpush1.xpose.msra.mxu0 0.0
    %89 = vmatprep.subr.mxu0 0.0
    %90 = vmatpush1.xpose.msra.mxu0 0.0
    %91 = vmatprep.subr.mxu0 0.0
    %92 = vmatpush1.xpose.msra.mxu0 0.0
    %93 = vmatprep.subr.mxu0 0.0
    %94 = vmatpush1.xpose.msra.mxu0 0.0
    %95 = vmatprep.subr.mxu0 0.0
    %96 = vmatpush1.xpose.msra.mxu0 0.0
    %97 = vmatprep.subr.mxu0 0.0
    %98 = vmatpush1.xpose.msra.mxu0 0.0
    %99 = vmatprep.subr.mxu0 0.0
    %100 = vmatpush1.xpose.msra.mxu0 0.0
    %101 = vmatprep.subr.mxu0 0.0
    %102 = vmatpush1.xpose.msra.mxu0 0.0
    %103 = vmatprep.subr.mxu0 0.0
    %104 = vmatpush1.xpose.msra.mxu0 0.0
    %105 = vmatprep.subr.mxu0 0.0
    %106 = vmatpush1.xpose.msra.mxu0 0.0
    %107 = vmatprep.subr.mxu0 0.0
    %108 = vmatpush1.xpose.msra.mxu0 0.0
    %109 = vmatprep.subr.mxu0 0.0
    %110 = vmatpush1.xpose.msra.mxu0 0.0
    %111 = vmatprep.subr.mxu0 0.0
    %112 = vmatpush1.xpose.msra.mxu0 0.0
    %113 = vmatprep.subr.mxu0 0.0
    %114 = vmatpush1.xpose.msra.mxu0 0.0
    %115 = vmatprep.subr.mxu0 0.0
    %116 = vmatpush1.xpose.msra.mxu0 0.0
    %117 = vmatprep.subr.mxu0 0.0
    %118 = vmatpush1.xpose.msra.mxu0 0.0
    %119 = vmatprep.subr.mxu0 0.0
    %120 = vmatpush1.xpose.msra.mxu0 0.0
    %121 = vmatprep.subr.mxu0 0.0
    %122 = vmatpush1.xpose.msra.mxu0 0.0
    %123 = vmatprep.subr.mxu0 0.0
    %124 = vmatpush1.xpose.msra.mxu0 0.0
    %125 = vmatprep.subr.mxu0 0.0
    %126 = vmatpush1.xpose.msra.mxu0 0.0
    %127 = vmatprep.subr.mxu0 0.0
    %128 = vmatpush1.xpose.msra.mxu0 0.0
    %129 = vmatprep.subr.mxu0 0.0
    %130 = vmatpush1.xpose.msra.mxu0 0.0
    %131 = vmatprep.subr.mxu0 0.0
    %132 = vmatpush1.xpose.msra.mxu0 0.0
    %133 = vmatprep.subr.mxu0 0.0
    %134 = vmatpush1.xpose.msra.mxu0 0.0
    %135 = vmatprep.subr.mxu0 0.0
    %136 = vmatpush1.xpose.msra.mxu0 0.0
    %137 = vmatprep.subr.mxu0 0.0
    %138 = vmatpush1.xpose.msra.mxu0 0.0
    %139 = vmatprep.subr.mxu0 0.0
    %140 = vmatpush1.xpose.msra.mxu0 0.0
    %141 = vmatprep.mubr.f32.mxu0 0.0
    %142 = vmatmul.mubr.f32.gmra.mrb[0].mxu0 %v60
    %v143 = vpop.f32.mrb[0].mxu0
    %v144 = vadd.f32 0.0, %v143
    %v145 = vpop.f32.mrb[0].mxu0
    %146 = vmatprep.mubr.f32.mxu0 0.0
    %147 = vmatmul.mubr.f32.gmra.mrb[0].mxu0 %v63
    %v148 = vpop.f32.mrb[0].mxu0
    %v149 = vadd.f32 0.0, %v148
    %v150 = vpop.f32.mrb[0].mxu0
    %151 = vdwg.mxu0
    %v152 = vadd.f32 %v50, %v144
    %v153 = vadd.f32 %v51, %v149
    %154 = vst.msk [vmem:[#allocation7] sm:$0xff] %vm58, %v152
    %155 = vst.msk [vmem:[#allocation7 + $0x8] sm:$0xff] %vm58, %v153
    // Predicated region
    $region26: #{tpu_custom_call.1} parent=1 // pred_check
      %p156 = pneg %p43
    $region27: #{tpu_custom_call.1} parent=1 // pred_check_branch
      %158 = sbr.rel (%p156) target = $region29
    $region28: #{tpu_custom_call.1} parent=1 // pred_region
      %v159 = vld [vmem:[#allocation7] sm:$0xff]
      %v160 = vld [vmem:[#allocation7 + $0x8] sm:$0xff]
      %v161 = vld [vmem:[%s2] sm:$0x1]
      %v163 = vlaneseq
      %v164 = vshrl.u32 %v163, 7
      %v165 = vsub.s32 0, %v164
      %v166 = vrot.slane %v161, %v165
      %v168 = vadd.f32 %v159, %v166
      %v169 = vadd.f32 %v160, %v166
      %v170 = vmul.f32 %v168, 0.5
      %v171 = vmul.f32 %v169, 0.5
      %v172 = vmul.f32 %v168, 0.70710677
      %v173 = vmul.f32 %v169, 0.70710677
      %v174 = verf.f32.pop %v172
      %v175 = verf.f32.pop %v173
      %v176 = vadd.f32 %v174, 1.0
      %v177 = vadd.f32 %v175, 1.0
      %v178 = vmul.f32 %v170, %v176
      %v179 = vmul.f32 %v171, %v177
      %180 = vst.msk [vmem:[#allocation7] sm:$0xff] %vm58, %v178
      %181 = vst.msk [vmem:[#allocation7 + $0x8] sm:$0xff] %vm58, %v179
    $region29: #{tpu_custom_call.1} parent=1 // pred_fallthru
      _
    // Predicated region
    $region30: #{tpu_custom_call.1} parent=1 // pred_check
      _
    $region31: #{tpu_custom_call.1} parent=1 // pred_check_branch
      %183 = sbr.rel (0) target = $region33
    $region32: #{tpu_custom_call.1} parent=1 // pred_region
      %s185 = ssub.s32 256, 256
      %186 = vsyncadd [#allocation4], %s185
      %s187 = sshll.u32 [#allocation7], 4
      %s188 = int_to_ptr.vmem [resolvable:$true] %s187
      %193 = dma.vmem_to_hbm [thread:$0]  %s188, 256, %s3, [#allocation4], 128, 128, 8
    $region33: #{tpu_custom_call.1} parent=1 // pred_fallthru
      _
    // Predicated region
    $region34: #{tpu_custom_call.1} parent=1 // pred_check
      _
    $region35: #{tpu_custom_call.1} parent=1 // pred_check_branch
      %195 = sbr.rel (0) target = $region37
    $region36: #{tpu_custom_call.1} parent=1 // pred_region
      %196 = dma.done [#allocation4], 256
    $region37: #{tpu_custom_call.1} parent=1 // pred_fallthru
      _
    %197 = vsyncpa [#allocation3], 1
    %198 = vsyncpa [#allocation6], 1
    %199 = vsyncpa [#allocation4], 1

</llo_original>
